<compile_context>
chip_gen: v5e
topology: v5e:2x2
jax: 0.10.0
libtpu: 0.0.40
codegen_flags: <defaults>
</compile_context>

<pallas_src>
import jax
import jax.numpy as jnp
from jax.experimental import pallas as pl
from jax.experimental.pallas import tpu as pltpu


_MAX_BLOCK_BYTES = 4 * 1024 * 1024       # per-operand block budget (all generations)
_VMEM_LIMIT_BYTES = 48 * 1024 * 1024     # <= v7x 64 MiB physical; plenty on v5e/v6e


def _round_up(v, m):
    return -(-v // m) * m


def _kernel(x_ref, m_ref, p_ref, o_ref):
    """out = relu(x)*m + poly(x)*(1-m), Horner + lerp (fewer VALU ops; VALU has slack anyway)."""
    p = p_ref[...]                                   # (c_t, 128) packed per-channel params
    p0 = p[:, 0:1][None]                             # (1, c_t, 1)
    p1 = p[:, 1:2][None]
    sp2 = p[:, 2:3][None]
    x = x_ref[...].astype(jnp.float32)               # (n_t, c_t, L)
    m = m_ref[...].astype(jnp.float32)[None]         # (1, c_t, L)
    relu_x = jnp.maximum(x, 0.0)
    poly = p0 + x * (p1 + x * sp2)                   # p0 + p1*x + (scale_x2*p2)*x^2
    o_ref[...] = (poly + m * (relu_x - poly)).astype(o_ref.dtype)


def _choose_tiling(N, C, HW, itemsize, budget_bytes):
    """Pick (mode, n_tile, c_tile, lane_tile) so one x block stays under budget."""
    budget_elems = max(1, budget_bytes // itemsize)
    if C * HW <= budget_elems:
        # Whole (C, HW) channel plane fits: fold batch elements into the block.
        n_tile = max(1, min(N, budget_elems // (C * HW)))
        return "batch", n_tile, C, HW
    if 8 * HW <= budget_elems:
        # Tile channels; keep full-HW rows (contiguous DMA, lane-dense stores).
        c_tile = max(8, (budget_elems // HW) // 8 * 8)
        return "channel", 1, c_tile, HW
    # Very large spatial map: tile the lane axis (ragged last block allowed).
    hw_ceil = _round_up(HW, 128)
    lane_tile = max(128, (budget_elems // C) // 128 * 128)
    lane_tile = min(lane_tile, hw_ceil)
    return "lane", 1, C, lane_tile


def relu_masked_autopoly_relay(x, mask, poly_para, scale_x2=1.0,
                               max_block_bytes=_MAX_BLOCK_BYTES):
    """x: (N, C, H, W); mask: (C, H, W); poly_para: 3 arrays of shape (1, C, 1, 1)."""
    N, C, H, W = x.shape
    HW = H * W

    x3 = x.reshape(N, C, HW)
    m2 = mask.reshape(C, HW)                         # keep original dtype; cast in-kernel

    # Pack per-channel params into one lane-padded operand; fold scale_x2 into
    # p2 here (traced, so varying scale_x2 does not trigger kernel recompiles).
    p0 = poly_para[0].reshape(C).astype(jnp.float32)
    p1 = poly_para[1].reshape(C).astype(jnp.float32)
    sp2 = jnp.asarray(scale_x2, jnp.float32) * poly_para[2].reshape(C).astype(jnp.float32)
    params = jnp.stack([p0, p1, sp2], axis=-1)       # (C, 3)
    params = jnp.pad(params, ((0, 0), (0, 128 - 3))) # (C, 128), tiny

    mode, n_tile, c_tile, lane_tile = _choose_tiling(
        N, C, HW, x.dtype.itemsize, max_block_bytes)

    if mode == "batch":
        grid = (pl.cdiv(N, n_tile),)
        in_specs = [
            pl.BlockSpec((n_tile, C, HW), lambda n: (n, 0, 0)),
            pl.BlockSpec((C, HW), lambda n: (0, 0)),
            pl.BlockSpec((C, 128), lambda n: (0, 0)),
        ]
        out_spec = pl.BlockSpec((n_tile, C, HW), lambda n: (n, 0, 0))
        dims = ("parallel",)
    elif mode == "channel":
        # N innermost: mask/params block indices are constant across the inner
        # loop, so their HBM reads amortize over the batch.
        grid = (pl.cdiv(C, c_tile), N)
        in_specs = [
            pl.BlockSpec((1, c_tile, HW), lambda c, n: (n, c, 0)),
            pl.BlockSpec((c_tile, HW), lambda c, n: (c, 0)),
            pl.BlockSpec((c_tile, 128), lambda c, n: (c, 0)),
        ]
        out_spec = pl.BlockSpec((1, c_tile, HW), lambda c, n: (n, c, 0))
        dims = ("parallel", "parallel")
    else:  # "lane"
        grid = (pl.cdiv(HW, lane_tile), N)
        in_specs = [
            pl.BlockSpec((1, C, lane_tile), lambda t, n: (n, 0, t)),
            pl.BlockSpec((C, lane_tile), lambda t, n: (0, t)),
            pl.BlockSpec((C, 128), lambda t, n: (0, 0)),
        ]
        out_spec = pl.BlockSpec((1, C, lane_tile), lambda t, n: (n, 0, t))
        dims = ("parallel", "parallel")

    out = pl.pallas_call(
        _kernel,
        out_shape=jax.ShapeDtypeStruct((N, C, HW), x.dtype),
        grid_spec=pltpu.PrefetchScalarGridSpec(
            num_scalar_prefetch=0,
            grid=grid,
            in_specs=in_specs,
            out_specs=out_spec,
        ),
        compiler_params=pltpu.CompilerParams(
            dimension_semantics=dims,
            vmem_limit_bytes=_VMEM_LIMIT_BYTES,
        ),
    )(x3, m2, params)

    return out.reshape(N, C, H, W)


def reference(x, mask, poly_para, scale_x2=1.0):
    m = mask[None]
    poly = poly_para[0] + poly_para[1] * x + scale_x2 * poly_para[2] * x * x
    return jnp.maximum(x, 0.0) * m + poly * (1.0 - m)


def _make_inputs(key, N, C, H, W):
    k_x, k_aux, k_p0, k_p1, k_p2, k_bits = jax.random.split(key, 6)
    x = jax.random.normal(k_x, (N, C, H, W), dtype=jnp.float32)
    # alpha_aux only feeds the backward/mask-update path, not the forward compute.
    _ = jax.random.uniform(k_aux, (C, H, W), dtype=jnp.float32)
    ones_mask = jnp.ones((C, H, W), dtype=jnp.float32)        # module-init mask (constant 1)
    bin_mask = (jax.random.uniform(k_bits, (C, H, W)) > 0.5).astype(jnp.float32)
    p0 = jax.random.uniform(k_p0, (1, C, 1, 1), minval=0.0, maxval=1e-4)
    p1 = jax.random.uniform(k_p1, (1, C, 1, 1), minval=1.0, maxval=1.0 + 1e-4)
    p2 = jax.random.uniform(k_p2, (1, C, 1, 1), minval=0.0, maxval=1e-4)
    return x, ones_mask, bin_mask, [p0, p1, p2]


def _check(out, x, mask, poly, scale_x2):
    ref = reference(x, mask, poly, scale_x2)
    assert out.shape == ref.shape and out.dtype == ref.dtype
    assert jnp.allclose(out, ref, atol=1e-5, rtol=1e-5)


if __name__ == "__main__":
    key = jax.random.PRNGKey(0)
    scale_x2 = 1.0
    k1, k2, k3, k4 = jax.random.split(key, 4)

    # 1) Module-default small shape: init mask (= ones, pure ReLU branch) and a
    #    binary mask (poly-replacement branch).  Batch-folded single-block path.
    x, ones_mask, bin_mask, poly = _make_inputs(k1, 2, 4, 16, 16)
    out = jax.block_until_ready(relu_masked_autopoly_relay(x, ones_mask, poly, scale_x2))
    _check(out, x, ones_mask, poly, scale_x2)
    out = jax.block_until_ready(relu_masked_autopoly_relay(x, bin_mask, poly, scale_x2))
    _check(out, x, bin_mask, poly, scale_x2)

    # 2) Larger feature map: default budget -> batch-folded path; a reduced
    #    block budget forces the lane-tiled grid with a ragged last lane block.
    x, ones_mask, bin_mask, poly = _make_inputs(k2, 2, 16, 96, 96)
    out = jax.block_until_ready(relu_masked_autopoly_relay(x, bin_mask, poly, scale_x2))
    _check(out, x, bin_mask, poly, scale_x2)
    out = jax.block_until_ready(
        relu_masked_autopoly_relay(x, bin_mask, poly, scale_x2,
                                   max_block_bytes=256 * 1024))
    _check(out, x, bin_mask, poly, scale_x2)

    # 3) Odd channel/spatial sizes, N=1: no padding or slicing passes — blocks
    #    use the full (C, HW) dims directly.
    x, ones_mask, bin_mask, poly = _make_inputs(k3, 1, 3, 10, 10)
    out = jax.block_until_ready(relu_masked_autopoly_relay(x, bin_mask, poly, scale_x2))
    _check(out, x, bin_mask, poly, scale_x2)

    # 4) Channel-tiled path (wide C, full-HW lane-dense rows) via reduced budget.
    x, ones_mask, bin_mask, poly = _make_inputs(k4, 2, 64, 32, 32)
    out = jax.block_until_ready(
        relu_masked_autopoly_relay(x, bin_mask, poly, scale_x2,
                                   max_block_bytes=128 * 1024))
    _check(out, x, bin_mask, poly, scale_x2)

    print("KERNEL_OK")
</pallas_src>

<mosaic_0001>
module attributes {stable_mosaic.version = 11 : i64} {
  func.func @_kernel(%arg0: i32, %arg1: memref<2x4x256xf32, #tpu.memory_space<vmem>>, %arg2: memref<4x256xf32, #tpu.memory_space<vmem>>, %arg3: memref<4x128xf32, #tpu.memory_space<vmem>>, %arg4: memref<2x4x256xf32, #tpu.memory_space<vmem>>) attributes {dimension_semantics = [#tpu.dimension_semantics<parallel>], iteration_bounds = array<i64: 1>, scalar_prefetch = 0 : i64, scratch_operands = 0 : i64, tpu.core_type = #tpu.core_type<tc>, window_params = [{transform_indices = @transform_0, window_bounds = array<i64: 2, 4, 256>}, {pipeline_mode = #tpu.pipeline_mode<synchronous>, transform_indices = @transform_1, window_bounds = array<i64: 4, 256>}, {pipeline_mode = #tpu.pipeline_mode<synchronous>, transform_indices = @transform_2, window_bounds = array<i64: 4, 128>}, {transform_indices = @transform_3, window_bounds = array<i64: 2, 4, 256>}]} {
    %c0 = arith.constant 0 : index
    %c0_0 = arith.constant 0 : index
    %0 = vector.load %arg3[%c0, %c0_0] : memref<4x128xf32, #tpu.memory_space<vmem>>, vector<4x128xf32>
    %1 = vector.extract_strided_slice %0 {offsets = [0, 0], sizes = [4, 1], strides = [1, 1]} : vector<4x128xf32> to vector<4x1xf32>
    %2 = vector.shape_cast %1 : vector<4x1xf32> to vector<1x4x1xf32>
    %3 = vector.extract_strided_slice %0 {offsets = [0, 1], sizes = [4, 1], strides = [1, 1]} : vector<4x128xf32> to vector<4x1xf32>
    %4 = vector.shape_cast %3 : vector<4x1xf32> to vector<1x4x1xf32>
    %5 = vector.extract_strided_slice %0 {offsets = [0, 2], sizes = [4, 1], strides = [1, 1]} : vector<4x128xf32> to vector<4x1xf32>
    %6 = vector.shape_cast %5 : vector<4x1xf32> to vector<1x4x1xf32>
    %c0_1 = arith.constant 0 : index
    %c0_2 = arith.constant 0 : index
    %c0_3 = arith.constant 0 : index
    %7 = vector.load %arg1[%c0_1, %c0_2, %c0_3] : memref<2x4x256xf32, #tpu.memory_space<vmem>>, vector<2x4x256xf32>
    %c0_4 = arith.constant 0 : index
    %c0_5 = arith.constant 0 : index
    %8 = vector.load %arg2[%c0_4, %c0_5] : memref<4x256xf32, #tpu.memory_space<vmem>>, vector<4x256xf32>
    %9 = vector.shape_cast %8 : vector<4x256xf32> to vector<1x4x256xf32>
    %cst = arith.constant 0.000000e+00 : f32
    %10 = vector.broadcast %cst : f32 to vector<2x4x256xf32>
    %11 = arith.maximumf %7, %10 : vector<2x4x256xf32>
    %12 = vector.broadcast %6 : vector<1x4x1xf32> to vector<2x4x256xf32>
    %13 = arith.mulf %7, %12 : vector<2x4x256xf32>
    %14 = vector.broadcast %4 : vector<1x4x1xf32> to vector<2x4x256xf32>
    %15 = arith.addf %14, %13 : vector<2x4x256xf32>
    %16 = arith.mulf %7, %15 : vector<2x4x256xf32>
    %17 = vector.broadcast %2 : vector<1x4x1xf32> to vector<2x4x256xf32>
    %18 = arith.addf %17, %16 : vector<2x4x256xf32>
    %19 = arith.subf %11, %18 : vector<2x4x256xf32>
    %20 = vector.broadcast %9 : vector<1x4x256xf32> to vector<2x4x256xf32>
    %21 = arith.mulf %20, %19 : vector<2x4x256xf32>
    %22 = arith.addf %18, %21 : vector<2x4x256xf32>
    %c0_6 = arith.constant 0 : index
    %c0_7 = arith.constant 0 : index
    %c0_8 = arith.constant 0 : index
    %23 = vector.load %arg4[%c0_6, %c0_7, %c0_8] : memref<2x4x256xf32, #tpu.memory_space<vmem>>, vector<2x4x256xf32>
    tpu.vector_store %arg4[%c0_6, %c0_7, %c0_8], %22 {strides = array<i32>} : memref<2x4x256xf32, #tpu.memory_space<vmem>>, vector<2x4x256xf32>,
    return
  }
  func.func @transform_0(%arg0: i32) -> (i32, i32, i32) {
    %c0_i32 = arith.constant 0 : i32
    %c0_i32_0 = arith.constant 0 : i32
    %c0_i32_1 = arith.constant 0 : i32
    return %arg0, %c0_i32, %c0_i32_0 : i32, i32, i32
  }
  func.func @transform_1(%arg0: i32) -> (i32, i32) {
    %c0_i32 = arith.constant 0 : i32
    %c0_i32_0 = arith.constant 0 : i32
    %c0_i32_1 = arith.constant 0 : i32
    return %c0_i32, %c0_i32_0 : i32, i32
  }
  func.func @transform_2(%arg0: i32) -> (i32, i32) {
    %c0_i32 = arith.constant 0 : i32
    %c0_i32_0 = arith.constant 0 : i32
    %c0_i32_1 = arith.constant 0 : i32
    return %c0_i32, %c0_i32_0 : i32, i32
  }
  func.func @transform_3(%arg0: i32) -> (i32, i32, i32) {
    %c0_i32 = arith.constant 0 : i32
    %c0_i32_0 = arith.constant 0 : i32
    %c0_i32_1 = arith.constant 0 : i32
    return %arg0, %c0_i32, %c0_i32_0 : i32, i32, i32
  }
}

</mosaic_0001>

<llo_original>
// kernel: tpu_custom_call.1
$region0: #{tpu_custom_call.1}
  #allocation0 [shape = 'u32[]', space=smem, size = 0x4, offset = 0x4, fixed_abs, tag = 'smem constant byte address 0x4 - core index']
  #allocation1 [shape = 'u32[72,128]{1,0:T(1,128)}', space=vmem, size = 0x9000, scoped, tag = 'internal scratch']
  %s0 = inlined_call_operand.hbm [shape: f32[2,4,256], index: 0, kind: input, shape index: {}]
  %s1 = inlined_call_operand.hbm [shape: f32[4,256], index: 1, kind: input, shape index: {}]
  %s2 = inlined_call_operand.hbm [shape: f32[4,128], index: 2, kind: input, shape index: {}]
  %s3 = inlined_call_operand.hbm [shape: f32[2,4,256], index: 3, kind: output, shape index: {}]
  %s4 = sld [smem:[#allocation0]]
  $region34: #{tpu_custom_call.1} parent=0
    _
  %s6 = ssub.s32 1, %s4
  %s7 = scalar_select 0, %s6, %s4
  $region1: #{tpu_custom_call.1} parent=0
    #allocation2 [shape = 'u8[8192]{0}', space=vmem, size = 0x2000, scoped, tag = 'input window, operand 0, single buffered']
    #allocation3 [shape = 's32[1]{0}', space=sflag, size = 0x4, scoped, tag = 'scoped memory for tpu_custom_call.1']
    #allocation4 [shape = 's32[1]{0}', space=sflag, size = 0x4, scoped, tag = 'scoped memory for tpu_custom_call.1']
    #allocation5 [shape = 'u8[4096]{0}', space=vmem, size = 0x1000, scoped, tag = 'input window, operand 1, single buffered']
    #allocation6 [shape = 's32[1]{0}', space=sflag, size = 0x4, scoped, tag = 'scoped memory for tpu_custom_call.1']
    #allocation7 [shape = 'u8[2048]{0}', space=vmem, size = 0x800, scoped, tag = 'input window, operand 2, single buffered']
    #allocation8 [shape = 'u8[8192]{0}', space=vmem, size = 0x2000, scoped, tag = 'output window, operand 0, single buffered']
    %8 = vsyncpa [#allocation3], 0
    %9 = vsyncpa [#allocation6], 0
    %10 = vsyncpa [#allocation4], 0
    // Predicated region
    $region2: #{tpu_custom_call.1} parent=1 // pred_check
      _
    $region3: #{tpu_custom_call.1} parent=1 // pred_check_branch
      %12 = sbr.rel (0) target = $region5
    $region4: #{tpu_custom_call.1} parent=1 // pred_region
      %14 = vsyncadd [#allocation3], 0
      %s15 = sshll.u32 %s0, 4
      %s16 = int_to_ptr.hbm [resolvable:$true] %s15
      %s17 = sshll.u32 [#allocation2], 4
      %s18 = int_to_ptr.vmem [resolvable:$true] %s17
      %23 = dma.hbm_to_vmem [thread:$0]  %s16, 256, %s18, [#allocation3], 128, 128, 8
    $region5: #{tpu_custom_call.1} parent=1 // pred_fallthru
      _
    // Predicated region
    $region6: #{tpu_custom_call.1} parent=1 // pred_check
      _
    $region7: #{tpu_custom_call.1} parent=1 // pred_check_branch
      %25 = sbr.rel (0) target = $region9
    $region8: #{tpu_custom_call.1} parent=1 // pred_region
      %27 = vsyncadd [#allocation6], 0
      %s29 = sshll.u32 %s1, 4
      %s30 = int_to_ptr.hbm [resolvable:$true] %s29
      %s31 = sshll.u32 [#allocation5], 4
      %s32 = int_to_ptr.vmem [resolvable:$true] %s31
      %34 = dma.hbm_to_vmem [thread:$0]  %s30, 128, %s32, [#allocation6]
    $region9: #{tpu_custom_call.1} parent=1 // pred_fallthru
      _
    // Predicated region
    $region10: #{tpu_custom_call.1} parent=1 // pred_check
      _
    $region11: #{tpu_custom_call.1} parent=1 // pred_check_branch
      %36 = sbr.rel (0) target = $region13
    $region12: #{tpu_custom_call.1} parent=1 // pred_region
      %38 = vsyncadd [#allocation6], 0
      %s40 = sshll.u32 %s2, 4
      %s41 = int_to_ptr.hbm [resolvable:$true] %s40
      %s42 = sshll.u32 [#allocation7], 4
      %s43 = int_to_ptr.vmem [resolvable:$true] %s42
      %45 = dma.hbm_to_vmem [thread:$0]  %s41, 64, %s43, [#allocation6]
    $region13: #{tpu_custom_call.1} parent=1 // pred_fallthru
      _
    // Predicated region
    $region14: #{tpu_custom_call.1} parent=1 // pred_check
      _
    $region15: #{tpu_custom_call.1} parent=1 // pred_check_branch
      %47 = sbr.rel (0) target = $region17
    $region16: #{tpu_custom_call.1} parent=1 // pred_region
      %49 = dma.done [#allocation3], 256
    $region17: #{tpu_custom_call.1} parent=1 // pred_fallthru
      _
    // Predicated region
    $region18: #{tpu_custom_call.1} parent=1 // pred_check
      _
    $region19: #{tpu_custom_call.1} parent=1 // pred_check_branch
      %51 = sbr.rel (0) target = $region21
    $region20: #{tpu_custom_call.1} parent=1 // pred_region
      %53 = dma.done [#allocation6], 128
    $region21: #{tpu_custom_call.1} parent=1 // pred_fallthru
      _
    // Predicated region
    $region22: #{tpu_custom_call.1} parent=1 // pred_check
      _
    $region23: #{tpu_custom_call.1} parent=1 // pred_check_branch
      %55 = sbr.rel (0) target = $region25
    $region24: #{tpu_custom_call.1} parent=1 // pred_region
      %57 = dma.done [#allocation6], 64
    $region25: #{tpu_custom_call.1} parent=1 // pred_fallthru
      _
    %v58 = vld [vmem:[#allocation7] sm:$0xf]
    %v59 = vld [vmem:[#allocation2] sm:$0xff]
    %v60 = vld [vmem:[#allocation2 + $0x8] sm:$0xff]
    %v61 = vld [vmem:[#allocation5] sm:$0xff]
    %v62 = vmax.f32 %v59, 0.0
    %v63 = vmax.f32 %v60, 0.0
    %65 = vset.pattern.permute.xlu0 2
    %66 = vperm.xlu0 %65, %v58
    %v67 = vpop.permute.xlu0 %66
    %v69 = vunpack.c.l.s4 839922192
    %v70 = vunpack.c.0.s8 %v69
    %v71 = vperm.slane %v67, %v70
    %v73 = vmul.f32 %v59, %v71
    %v74 = vmul.f32 %v60, %v71
    %75 = vset.pattern.permute.xlu0 1
    %76 = vperm.xlu0 %75, %v58
    %v77 = vpop.permute.xlu0 %76
    %81 = vst [vmem:[#allocation1] ss:$2 sm:$0xff] %v73
    %v82 = vld.sshfl [vmem:[#allocation1] sm:$0xff pattern:$0x75316420]
    %v83 = vld.sshfl [vmem:[#allocation1 + $0x8] sm:$0xff pattern:$0x75316420]
    %s84 = scalar_lea.vmem [#allocation1], 16
    %85 = vst [vmem:[%s84] ss:$2 sm:$0xff] %v74
    %v86 = vld.sshfl [vmem:[#allocation1 + $0x10] sm:$0xff pattern:$0x75316420]
    %v87 = vld.sshfl [vmem:[#allocation1 + $0x18] sm:$0xff pattern:$0x75316420]
    %v92 = vadd.f32 %v77, %v82
    %v93 = vadd.f32 %v77, %v83
    %v94 = vadd.f32 %v77, %v86
    %v95 = vadd.f32 %v77, %v87
    %v100 = vrot.slane %v93, 4
    %v101 = vrot.slane %v95, 4
    %vm102 = vcmask 1043456
    %v103 = vsel %vm102, %v92, %v100
    %v104 = vsel %vm102, %v94, %v101
    %v107 = vmul.f32 %v59, %v103
    %v108 = vmul.f32 %v60, %v104
    %109 = vset.pattern.permute.xlu0 0
    %110 = vperm.xlu0 %109, %v58
    %v111 = vpop.permute.xlu0 %110
    %115 = vst [vmem:[#allocation1] ss:$2 sm:$0xff] %v107
    %v116 = vld.sshfl [vmem:[#allocation1] sm:$0xff pattern:$0x75316420]
    %v117 = vld.sshfl [vmem:[#allocation1 + $0x8] sm:$0xff pattern:$0x75316420]
    %s118 = scalar_lea.vmem [#allocation1], 16
    %119 = vst [vmem:[%s118] ss:$2 sm:$0xff] %v108
    %v120 = vld.sshfl [vmem:[#allocation1 + $0x10] sm:$0xff pattern:$0x75316420]
    %v121 = vld.sshfl [vmem:[#allocation1 + $0x18] sm:$0xff pattern:$0x75316420]
    %v126 = vadd.f32 %v111, %v116
    %v127 = vadd.f32 %v111, %v117
    %v128 = vadd.f32 %v111, %v120
    %v129 = vadd.f32 %v111, %v121
    %v134 = vrot.slane %v127, 4
    %v135 = vrot.slane %v129, 4
    %v136 = vsel %vm102, %v126, %v134
    %v137 = vsel %vm102, %v128, %v135
    %v140 = vsub.f32 %v62, %v136
    %v141 = vsub.f32 %v63, %v137
    %v142 = vmul.f32 %v61, %v140
    %v143 = vmul.f32 %v61, %v141
    %146 = vst [vmem:[#allocation1] ss:$2 sm:$0xff] %v142
    %v147 = vld.sshfl [vmem:[#allocation1] sm:$0xff pattern:$0x75316420]
    %v148 = vld.sshfl [vmem:[#allocation1 + $0x8] sm:$0xff pattern:$0x75316420]
    %s149 = scalar_lea.vmem [#allocation1], 16
    %150 = vst [vmem:[%s149] ss:$2 sm:$0xff] %v143
    %v151 = vld.sshfl [vmem:[#allocation1 + $0x10] sm:$0xff pattern:$0x75316420]
    %v152 = vld.sshfl [vmem:[#allocation1 + $0x18] sm:$0xff pattern:$0x75316420]
    %v157 = vadd.f32 %v126, %v147
    %v158 = vadd.f32 %v127, %v148
    %v159 = vadd.f32 %v128, %v151
    %v160 = vadd.f32 %v129, %v152
    %v165 = vrot.slane %v158, 4
    %v166 = vrot.slane %v160, 4
    %v167 = vsel %vm102, %v157, %v165
    %v168 = vsel %vm102, %v159, %v166
    %171 = vst [vmem:[#allocation8] sm:$0xff] %v167
    %172 = vst [vmem:[#allocation8 + $0x8] sm:$0xff] %v168
    // Predicated region
    $region26: #{tpu_custom_call.1} parent=1 // pred_check
      _
    $region27: #{tpu_custom_call.1} parent=1 // pred_check_branch
      %174 = sbr.rel (0) target = $region29
    $region28: #{tpu_custom_call.1} parent=1 // pred_region
      %176 = vsyncadd [#allocation4], 0
      %s177 = sshll.u32 [#allocation8], 4
      %s178 = int_to_ptr.vmem [resolvable:$true] %s177
      %s179 = sshll.u32 %s3, 4
      %s180 = int_to_ptr.hbm [resolvable:$true] %s179
      %185 = dma.vmem_to_hbm [thread:$0]  %s178, 256, %s180, [#allocation4], 128, 128, 8
    $region29: #{tpu_custom_call.1} parent=1 // pred_fallthru
      _
    // Predicated region
    $region30: #{tpu_custom_call.1} parent=1 // pred_check
      _
    $region31: #{tpu_custom_call.1} parent=1 // pred_check_branch
      %187 = sbr.rel (0) target = $region33
    $region32: #{tpu_custom_call.1} parent=1 // pred_region
      %189 = dma.done [#allocation4], 256
    $region33: #{tpu_custom_call.1} parent=1 // pred_fallthru
      _
    %190 = vsyncpa [#allocation3], 1
    %191 = vsyncpa [#allocation6], 1
    %192 = vsyncpa [#allocation4], 1

</llo_original>
